<compile_context>
chip_gen: v7x
topology: tpu7x:2x2x1
jax: 0.10.0
libtpu: 0.0.40
codegen_flags: <defaults>
</compile_context>

<pallas_src>
import functools

import jax
import jax.numpy as jnp
import numpy as np
from jax.experimental import pallas as pl
from jax.experimental.pallas import tpu as pltpu

MAX_LENGTH = 77          # BERTTokenizer(max_length=77)
PAD_ID = 0               # [PAD]
CLS_ID = 101             # [CLS]
SEP_ID = 102             # [SEP]
VOCAB = 30522            # bert-base-uncased; < 2**15 so wordpiece ids fit int16
LANE = 128               # lane-aligned working width (>= MAX_LENGTH)

TILE_B_MAX = 4096        # rows per grid step (double-buffered VMEM ~10 MiB)
SUB_ALIGN = 32           # sublane alignment safe for int8/int16/int32 tiles


def _round_up(x, m):
    return (x + m - 1) // m * m


def _tokenize_kernel(len_ref, raw_ref, out_ref, *, max_length):
    """One (tile_b, LANE) tile of rows per grid step.

    len_ref: VMEM (tile_b, 1)    int32        -- raw wordpiece count per example
    raw_ref: VMEM (tile_b, LANE) int16/int32  -- raw wordpiece ids (lanes 0..len-1 valid)
    out_ref: VMEM (tile_b, LANE) int32/int16  -- [CLS] body... [SEP] [PAD]...
    """
    tb, lane = out_ref.shape

    # Widen narrow ids right after load; free VPU work hidden under the DMA.
    raw = raw_ref[...].astype(jnp.int32)

    # truncation=True -> body keeps at most max_length-2 tokens.  Clamp below at 0
    # so garbage lengths (e.g. from an overhanging final block) can never underflow.
    n_body = jnp.clip(len_ref[...].astype(jnp.int32), 0, max_length - 2)   # (tb, 1)

    pos = jax.lax.broadcasted_iota(jnp.int32, (tb, lane), 1)               # (tb, lane)

    # shifted[:, p] == raw[:, p-1]  (lane rotate on the otherwise-idle XLU;
    # lane 0 is overwritten by CLS below).
    shifted = pltpu.roll(raw, shift=1, axis=1)

    out = jnp.where(
        pos == 0,
        CLS_ID,
        jnp.where(
            pos <= n_body,
            shifted,
            jnp.where(pos == n_body + 1, SEP_ID, PAD_ID),
        ),
    )
    out_ref[...] = out.astype(out_ref.dtype)


def _looks_like_two_tc_chip():
    # v7x has 2 TensorCores per chip; give each its own 'parallel' grid step.
    try:
        kind = jax.devices()[0].device_kind.lower()
    except Exception:
        return False
    return "7" in kind


def bert_tokenize(raw_ids, lengths, max_length=MAX_LENGTH, *,
                  lane_dense=True, out_dtype=jnp.int32, min_grid_steps=None):
    """Tensor part of BERTTokenizer.forward.

    raw_ids: [batch, 128] int16/int32 pre-tokenized wordpiece ids
    lengths: [batch] int32 number of valid wordpiece ids per row

    Returns the lane-dense [batch, 128] id buffer by default (columns beyond
    1 + body + 1 are PAD_ID); slice [:, :max_length] at the consumer, or pass
    lane_dense=False for the module-shaped [batch, max_length] (extra HBM copy).
    """
    batch, width = raw_ids.shape
    assert width == LANE and 2 <= max_length <= LANE
    assert lengths.shape[0] == batch
    # int16 ids only hold vocabularies < 2**15 (fine for bert-base-uncased's
    # 30522; NOT for e.g. multilingual BERT's 119547) -- guard the dtype here.
    assert raw_ids.dtype in (jnp.int16, jnp.int32), raw_ids.dtype

    if min_grid_steps is None:
        min_grid_steps = 2 if _looks_like_two_tc_chip() else 1

    # Largest sublane-aligned tiles (fewest ~0.35 us grid steps), but at least
    # `min_grid_steps` steps on 2-TC chips so both cores stream from HBM.
    tile_b = min(TILE_B_MAX, _round_up(batch, SUB_ALIGN))
    if min_grid_steps > 1:
        per_core = _round_up(pl.cdiv(batch, min_grid_steps), SUB_ALIGN)
        tile_b = min(tile_b, max(per_core, SUB_ALIGN))
    if tile_b >= batch:
        tile_b = batch                      # single block == exact array dims
    grid = (pl.cdiv(batch, tile_b),)

    lengths2d = lengths.astype(jnp.int32).reshape(batch, 1)

    # Advisory cost so XLA can overlap this mem-bound call with its neighbors.
    out_itemsize = np.dtype(out_dtype).itemsize
    cost = pl.CostEstimate(
        flops=0,
        transcendentals=0,
        bytes_accessed=batch * (raw_ids.dtype.itemsize * LANE + 4 + out_itemsize * LANE),
    )

    # No jnp.pad / [:batch] slice: a cdiv grid lets the final block overhang; its
    # out-of-range reads are discarded and its writes are masked on write-back.
    dense = pl.pallas_call(
        functools.partial(_tokenize_kernel, max_length=max_length),
        out_shape=jax.ShapeDtypeStruct((batch, LANE), out_dtype),
        grid=grid,
        in_specs=[
            pl.BlockSpec((tile_b, 1), lambda i: (i, 0)),      # per-row lengths
            pl.BlockSpec((tile_b, LANE), lambda i: (i, 0)),   # raw wordpiece ids
        ],
        out_specs=pl.BlockSpec((tile_b, LANE), lambda i: (i, 0)),
        compiler_params=pltpu.CompilerParams(dimension_semantics=("parallel",)),
        cost_estimate=cost,
    )(lengths2d, raw_ids)

    if lane_dense:
        return dense          # [batch, LANE]; columns >= 1+body+1 are PAD_ID
    # Module-shaped return; the trailing slice is an extra full HBM round trip,
    # so prefer lane_dense=True and slice/fuse at the consumer in hot paths.
    return dense[:, :max_length]


def _reference(raw_ids, lengths):
    raw = np.asarray(raw_ids).astype(np.int32)
    lens = np.asarray(lengths)
    out = np.full((raw.shape[0], MAX_LENGTH), PAD_ID, dtype=np.int32)
    for b in range(raw.shape[0]):
        L = int(min(max(int(lens[b]), 0), MAX_LENGTH - 2))
        out[b, 0] = CLS_ID
        out[b, 1:1 + L] = raw[b, :L]
        out[b, 1 + L] = SEP_ID
    return out


if __name__ == "__main__":
    key = jax.random.PRNGKey(0)
    k_ids, k_len = jax.random.split(key)

    batch = 2
    # Deterministic synthetic "wordpiece ids" standing in for tokenizer(text).
    assert VOCAB <= 32767  # int16 packing is only valid for vocab < 2**15
    raw_ids = jax.random.randint(k_ids, (batch, LANE), 1000, VOCAB, dtype=jnp.int32)
    raw_ids = raw_ids.astype(jnp.int16)          # halve HBM read traffic
    # Short and long examples (exercises truncation to 75 body tokens).
    lengths = jax.random.randint(k_len, (batch,), 5, 120, dtype=jnp.int32)

    # Default (hot) path: lane-dense [batch, 128]; consumer takes [:, :77].
    dense = jax.block_until_ready(bert_tokenize(raw_ids, lengths))
    assert dense.shape == (batch, LANE) and dense.dtype == jnp.int32
    ref = _reference(raw_ids, lengths)
    np.testing.assert_array_equal(np.asarray(dense[:, :MAX_LENGTH]), ref)
    np.testing.assert_array_equal(
        np.asarray(dense[:, MAX_LENGTH:]),
        np.full((batch, LANE - MAX_LENGTH), PAD_ID, dtype=np.int32))

    # Module-shaped path: [batch, 77] int32 (adds the trailing slice).
    tokens = jax.block_until_ready(bert_tokenize(raw_ids, lengths, lane_dense=False))
    assert tokens.shape == (batch, MAX_LENGTH)
    np.testing.assert_array_equal(np.asarray(tokens), ref)

    # Narrow-output option (downstream gather accepts int16 ids).
    dense16 = jax.block_until_ready(
        bert_tokenize(raw_ids, lengths, out_dtype=jnp.int16))
    np.testing.assert_array_equal(
        np.asarray(dense16[:, :MAX_LENGTH]).astype(np.int32), ref)

    # Non-multiple batch with a forced 2-way split: exercises the pad-free
    # cdiv grid whose overhanging final block is masked on write-back.
    k2_ids, k2_len = jax.random.split(jax.random.PRNGKey(1))
    batch2 = 40
    raw2 = jax.random.randint(k2_ids, (batch2, LANE), 1000, VOCAB,
                              dtype=jnp.int32).astype(jnp.int16)
    len2 = jax.random.randint(k2_len, (batch2,), 1, 120, dtype=jnp.int32)
    dense2 = jax.block_until_ready(bert_tokenize(raw2, len2, min_grid_steps=2))
    np.testing.assert_array_equal(np.asarray(dense2[:, :MAX_LENGTH]),
                                  _reference(raw2, len2))

    print("KERNEL_OK")
</pallas_src>

<mosaic_0001>
module attributes {stable_mosaic.version = 11 : i64} {
  func.func @_tokenize_kernel(%arg0: i32, %arg1: memref<2x1xi32, #tpu.memory_space<vmem>>, %arg2: memref<2x128xi16, #tpu.memory_space<vmem>>, %arg3: memref<2x128xi32, #tpu.memory_space<vmem>>) attributes {dimension_semantics = [#tpu.dimension_semantics<parallel>], iteration_bounds = array<i64: 1>, scalar_prefetch = 0 : i64, scratch_operands = 0 : i64, tpu.core_type = #tpu.core_type<tc>, window_params = [{transform_indices = @transform_0, window_bounds = array<i64: 2, 1>}, {transform_indices = @transform_1, window_bounds = array<i64: 2, 128>}, {transform_indices = @transform_2, window_bounds = array<i64: 2, 128>}]} {
    %c0 = arith.constant 0 : index
    %c0_0 = arith.constant 0 : index
    %0 = vector.load %arg2[%c0, %c0_0] : memref<2x128xi16, #tpu.memory_space<vmem>>, vector<2x128xi16>
    %1 = arith.extsi %0 : vector<2x128xi16> to vector<2x128xi32>
    %c0_1 = arith.constant 0 : index
    %c0_2 = arith.constant 0 : index
    %2 = vector.load %arg1[%c0_1, %c0_2] : memref<2x1xi32, #tpu.memory_space<vmem>>, vector<2x1xi32>
    %c0_i32 = arith.constant 0 : i32
    %c75_i32 = arith.constant 75 : i32
    %3 = vector.broadcast %c0_i32 : i32 to vector<2x1xi32>
    %4 = arith.maxsi %3, %2 : vector<2x1xi32>
    %5 = vector.broadcast %c75_i32 : i32 to vector<2x1xi32>
    %6 = arith.minsi %5, %4 : vector<2x1xi32>
    %7 = tpu.iota {dimensions = array<i32: 1>} : vector<2x128xi32>
    %c1_i32 = arith.constant 1 : i32
    %8 = tpu.dynamic_rotate %1 by %c1_i32 dim 1 : vector<2x128xi32>, i32 -> vector<2x128xi32>
    %c0_i32_3 = arith.constant 0 : i32
    %9 = vector.broadcast %c0_i32_3 : i32 to vector<2x128xi32>
    %10 = arith.cmpi eq, %7, %9 : vector<2x128xi32>
    %11 = vector.broadcast %6 : vector<2x1xi32> to vector<2x128xi32>
    %12 = arith.cmpi sle, %7, %11 : vector<2x128xi32>
    %c1_i32_4 = arith.constant 1 : i32
    %13 = vector.broadcast %c1_i32_4 : i32 to vector<2x1xi32>
    %14 = arith.addi %6, %13 : vector<2x1xi32>
    %15 = vector.broadcast %14 : vector<2x1xi32> to vector<2x128xi32>
    %16 = arith.cmpi eq, %7, %15 : vector<2x128xi32>
    %c102_i32 = arith.constant 102 : i32
    %c0_i32_5 = arith.constant 0 : i32
    %17 = vector.broadcast %c102_i32 : i32 to vector<2x128xi32>
    %18 = vector.broadcast %c0_i32_5 : i32 to vector<2x128xi32>
    %19 = arith.select %16, %17, %18 : vector<2x128xi1>, vector<2x128xi32>
    %20 = arith.select %12, %8, %19 : vector<2x128xi1>, vector<2x128xi32>
    %c101_i32 = arith.constant 101 : i32
    %21 = vector.broadcast %c101_i32 : i32 to vector<2x128xi32>
    %22 = arith.select %10, %21, %20 : vector<2x128xi1>, vector<2x128xi32>
    %c0_6 = arith.constant 0 : index
    %c0_7 = arith.constant 0 : index
    %23 = vector.load %arg3[%c0_6, %c0_7] : memref<2x128xi32, #tpu.memory_space<vmem>>, vector<2x128xi32>
    tpu.vector_store %arg3[%c0_6, %c0_7], %22 {strides = array<i32>} : memref<2x128xi32, #tpu.memory_space<vmem>>, vector<2x128xi32>,
    return
  }
  func.func @transform_0(%arg0: i32) -> (i32, i32) {
    %c0_i32 = arith.constant 0 : i32
    %c0_i32_0 = arith.constant 0 : i32
    return %arg0, %c0_i32 : i32, i32
  }
  func.func @transform_1(%arg0: i32) -> (i32, i32) {
    %c0_i32 = arith.constant 0 : i32
    %c0_i32_0 = arith.constant 0 : i32
    return %arg0, %c0_i32 : i32, i32
  }
  func.func @transform_2(%arg0: i32) -> (i32, i32) {
    %c0_i32 = arith.constant 0 : i32
    %c0_i32_0 = arith.constant 0 : i32
    return %arg0, %c0_i32 : i32, i32
  }
}

</mosaic_0001>

<llo_original>
// kernel: tpu_custom_call.1
$region0: #{tpu_custom_call.1}
  #allocation0 [shape = 'u32[]', space=smem, size = 0x4, offset = 0x4, fixed_abs, tag = 'smem constant byte address 0x4 - core index']
  #allocation1 [shape = 'u32[144,128]{1,0:T(1,128)}', space=vmem, size = 0x12000, scoped, tag = 'internal scratch']
  %s0 = inlined_call_operand.vmem [shape: s32[2,1], index: 0, kind: input, shape index: {}]
  %s1 = inlined_call_operand.vmem [shape: s16[2,128], index: 1, kind: input, shape index: {}]
  %s2 = inlined_call_operand.hbm [shape: s32[2,128], index: 2, kind: output, shape index: {}]
  %s3 = sld [smem:[#allocation0]]
  $region18: #{tpu_custom_call.1} parent=0
    _
  %s5 = ssub.s32 1, %s3
  %s6 = scalar_select 0, %s5, %s3
  $region1: #{tpu_custom_call.1} parent=0
    #allocation2 [shape = 'u8[1024]{0}', space=vmem, size = 0x400, scoped, tag = 'output window, operand 0, single buffered']
    #allocation3 [shape = 's32[1]{0}', space=sflag, size = 0x4, scoped, tag = 'scoped memory for tpu_custom_call.1']
    %7 = vsyncpa [#allocation3], 0
    // Predicated region
    $region2: #{tpu_custom_call.1} parent=1 // pred_check
      _
    $region3: #{tpu_custom_call.1} parent=1 // pred_check_branch
      %9 = sbr.rel (0) target = $region5
    $region4: #{tpu_custom_call.1} parent=1 // pred_region
      _
    $region5: #{tpu_custom_call.1} parent=1 // pred_fallthru
      _
    // Predicated region
    $region6: #{tpu_custom_call.1} parent=1 // pred_check
      _
    $region7: #{tpu_custom_call.1} parent=1 // pred_check_branch
      %11 = sbr.rel (0) target = $region9
    $region8: #{tpu_custom_call.1} parent=1 // pred_region
      _
    $region9: #{tpu_custom_call.1} parent=1 // pred_fallthru
      _
    %v12 = vld [vmem:[%s1] sm:$0x1]
    %v13 = vunpack.c.l.b16 %v12
    %v14 = vld [vmem:[%s0] sm:$0x3]
    %vm15 = vcmp.gt.s32.totalorder %v14, 0
    %v16 = vsel %vm15, %v14, 0
    %vm17 = vcmp.lt.s32.totalorder %v16, 75
    %v18 = vsel %vm17, %v16, 75
    %v19 = vlaneseq
    %v20 = vand.u32 %v19, 127
    %21 = vrot.lane.b32.xlu0 %v13, 1
    %v22 = vpop.permute.xlu0 %21
    %vm23 = vcmp.eq.s32.totalorder %v20, 0
    %24 = vset.pattern.permute.xlu0 0
    %25 = vperm.xlu0 %24, %v18
    %v26 = vpop.permute.xlu0 %25
    %vm27 = vcmp.le.s32.totalorder %v20, %v26
    %v28 = vadd.s32 %v18, 1
    %29 = vset.pattern.permute.xlu0 0
    %30 = vperm.xlu0 %29, %v28
    %v31 = vpop.permute.xlu0 %30
    %vm32 = vcmp.eq.s32.totalorder %v20, %v31
    %v33 = vsel %vm32, 102, 0
    %v34 = vsel %vm27, %v22, %v33
    %v35 = vsel %vm23, 101, %v34
    %36 = vst [vmem:[#allocation2] sm:$0x3] %v35
    // Predicated region
    $region10: #{tpu_custom_call.1} parent=1 // pred_check
      _
    $region11: #{tpu_custom_call.1} parent=1 // pred_check_branch
      %38 = sbr.rel (0) target = $region13
    $region12: #{tpu_custom_call.1} parent=1 // pred_region
      %s40 = ssub.s32 32, 32
      %41 = vsyncadd [#allocation3], %s40
      %s43 = sshll.u32 [#allocation2], 4
      %s44 = int_to_ptr.vmem [resolvable:$true] %s43
      %46 = dma.vmem_to_hbm [thread:$0]  %s44, 32, %s2, [#allocation3]
    $region13: #{tpu_custom_call.1} parent=1 // pred_fallthru
      _
    // Predicated region
    $region14: #{tpu_custom_call.1} parent=1 // pred_check
      _
    $region15: #{tpu_custom_call.1} parent=1 // pred_check_branch
      %48 = sbr.rel (0) target = $region17
    $region16: #{tpu_custom_call.1} parent=1 // pred_region
      %49 = dma.done [#allocation3], 32
    $region17: #{tpu_custom_call.1} parent=1 // pred_fallthru
      _
    %50 = vsyncpa [#allocation3], 1

</llo_original>
